<compile_context>
chip_gen: v6e
topology: v6e:2x2x1
jax: 0.10.0
libtpu: 0.0.40
codegen_flags: <defaults>
</compile_context>

<pallas_src>
import jax
import jax.numpy as jnp
from jax import lax
from jax.experimental import pallas as pl
from jax.experimental.pallas import tpu as pltpu


def _ln_affine_kernel(x_ref, g_ref, b_ref, o_ref, *, eps):
    # x_ref: (TN, D) block -- TN samples per grid step, lane-dense last dim.
    x = x_ref[...].astype(jnp.float32)

    # Per-sample mean / biased variance over all C*H*W elements (matches
    # F.layer_norm(x, x.shape[1:])). Shifted two-pass form for stability.
    mean = jnp.mean(x, axis=-1, keepdims=True)          # (TN, 1)
    xc = x - mean                                       # hoisted, reused twice
    var = jnp.mean(xc * xc, axis=-1, keepdims=True)     # (TN, 1)
    x_hat = xc * lax.rsqrt(var + eps)                   # EUP rsqrt

    # Per-channel affine, pre-broadcast to a (1, D) lane-dense row outside the
    # kernel -> plain VPU FMA here (broadcast over sublanes only).
    g = g_ref[...].astype(jnp.float32)
    b = b_ref[...].astype(jnp.float32)
    o_ref[...] = (x_hat * g + b).astype(o_ref.dtype)


def _ln_plain_kernel(x_ref, o_ref, *, eps):
    x = x_ref[...].astype(jnp.float32)
    mean = jnp.mean(x, axis=-1, keepdims=True)
    xc = x - mean
    var = jnp.mean(xc * xc, axis=-1, keepdims=True)
    o_ref[...] = (xc * lax.rsqrt(var + eps)).astype(o_ref.dtype)


def _pick_block_rows(n, d, itemsize):
    """Choose TN (samples per grid step) from a VMEM budget."""
    if n <= 8:
        return n  # block second-to-last dim == full array dim -> always legal
    per_row = d * itemsize
    budget = 6 * 1024 * 1024  # bytes per block per pipeline buffer
    tn = max(8, (budget // per_row) // 8 * 8)
    # Keep at least 2 grid steps when there is enough work (v7x has 2 TCs that
    # split "parallel" grid axes; a grid of 1 leaves half the chip idle).
    if n >= 16:
        tn = min(tn, max(8, (n // 2) // 8 * 8))
    # Never exceed the (8-padded) batch.
    tn = min(tn, pl.cdiv(n, 8) * 8)
    return tn


def layer_norm(x, gamma=None, beta=None, eps=1e-5, affine=True, block_rows=None):
    """x: (N, C, H, W) NCHW. gamma/beta: (C,). Returns (N, C, H, W)."""
    N, C, H, W = x.shape
    HW = H * W
    D = C * HW

    # Lane-dense flat layout: one sample per row.
    x_flat = x.reshape(N, D)

    itemsize = jnp.dtype(x.dtype).itemsize
    tn = block_rows if block_rows is not None else _pick_block_rows(N, D, itemsize)

    # Pad batch to a multiple of TN (zero rows normalize to finite values via
    # rsqrt(eps); sliced off below).
    n_pad = pl.cdiv(N, tn) * tn
    if n_pad != N:
        x_flat = jnp.pad(x_flat, ((0, n_pad - N), (0, 0)))
    grid = (n_pad // tn,)

    compiler_params = pltpu.CompilerParams(
        dimension_semantics=("parallel",),
        vmem_limit_bytes=40 * 1024 * 1024,
    )
    row_spec = pl.BlockSpec((tn, D), lambda i: (i, 0))

    if affine:
        # Pre-broadcast per-channel params to a (1, D) row (one-time XLA cost).
        g_row = jnp.repeat(gamma.astype(x.dtype), HW).reshape(1, D)
        b_row = jnp.repeat(beta.astype(x.dtype), HW).reshape(1, D)
        kernel = lambda xr, gr, br, orf: _ln_affine_kernel(xr, gr, br, orf, eps=eps)
        out = pl.pallas_call(
            kernel,
            out_shape=jax.ShapeDtypeStruct((n_pad, D), x.dtype),
            grid_spec=pltpu.PrefetchScalarGridSpec(
                num_scalar_prefetch=0,
                grid=grid,
                in_specs=[
                    row_spec,
                    pl.BlockSpec((1, D), lambda i: (0, 0)),
                    pl.BlockSpec((1, D), lambda i: (0, 0)),
                ],
                out_specs=row_spec,
            ),
            compiler_params=compiler_params,
        )(x_flat, g_row, b_row)
    else:
        kernel = lambda xr, orf: _ln_plain_kernel(xr, orf, eps=eps)
        out = pl.pallas_call(
            kernel,
            out_shape=jax.ShapeDtypeStruct((n_pad, D), x.dtype),
            grid_spec=pltpu.PrefetchScalarGridSpec(
                num_scalar_prefetch=0,
                grid=grid,
                in_specs=[row_spec],
                out_specs=row_spec,
            ),
            compiler_params=compiler_params,
        )(x_flat)

    if n_pad != N:
        out = out[:N]
    return out.reshape(N, C, H, W)


def _reference(x, gamma, beta, eps=1e-5):
    # Pure-JAX reference mirroring the PyTorch forward.
    N = x.shape[0]
    xf = x.reshape(N, -1).astype(jnp.float32)
    mean = jnp.mean(xf, axis=1, keepdims=True)
    var = jnp.mean((xf - mean) ** 2, axis=1, keepdims=True)
    xn = ((xf - mean) * lax.rsqrt(var + eps)).reshape(x.shape)
    return xn * gamma.reshape(1, -1, 1, 1) + beta.reshape(1, -1, 1, 1)


if __name__ == "__main__":
    key = jax.random.PRNGKey(0)
    kx, kg = jax.random.split(key)

    N, C, H, W = 2, 4, 16, 16
    x = jax.random.normal(kx, (N, C, H, W), dtype=jnp.float32)

    # Deterministic parameter init matching the module's __init__:
    # gamma ~ U[0,1) of shape (C,), beta = zeros(C).
    gamma = jax.random.uniform(kg, (C,), dtype=jnp.float32)
    beta = jnp.zeros((C,), dtype=jnp.float32)

    y = layer_norm(x, gamma, beta, eps=1e-5, affine=True)
    y = jax.block_until_ready(y)

    y_ref = _reference(x, gamma, beta, eps=1e-5)
    assert y.shape == (N, C, H, W)
    assert jnp.allclose(y, y_ref, atol=1e-5, rtol=1e-5), "mismatch vs reference"

    # Also exercise the affine=False specialization once.
    y2 = jax.block_until_ready(layer_norm(x, eps=1e-5, affine=False))
    y2_ref = _reference(x, jnp.ones((C,), jnp.float32), jnp.zeros((C,), jnp.float32))
    assert jnp.allclose(y2, y2_ref, atol=1e-5, rtol=1e-5), "mismatch (no affine)"

    print("KERNEL_OK")
</pallas_src>

<mosaic_0001>
module attributes {stable_mosaic.version = 11 : i64} {
  func.func @_lambda_(%arg0: i32, %arg1: memref<2x1024xf32, #tpu.memory_space<vmem>>, %arg2: memref<1x1024xf32, #tpu.memory_space<vmem>>, %arg3: memref<1x1024xf32, #tpu.memory_space<vmem>>, %arg4: memref<2x1024xf32, #tpu.memory_space<vmem>>) attributes {dimension_semantics = [#tpu.dimension_semantics<parallel>], iteration_bounds = array<i64: 1>, scalar_prefetch = 0 : i64, scratch_operands = 0 : i64, tpu.core_type = #tpu.core_type<tc>, window_params = [{transform_indices = @transform_0, window_bounds = array<i64: 2, 1024>}, {pipeline_mode = #tpu.pipeline_mode<synchronous>, transform_indices = @transform_1, window_bounds = array<i64: 1, 1024>}, {pipeline_mode = #tpu.pipeline_mode<synchronous>, transform_indices = @transform_2, window_bounds = array<i64: 1, 1024>}, {transform_indices = @transform_3, window_bounds = array<i64: 2, 1024>}]} {
    %c0 = arith.constant 0 : index
    %c0_0 = arith.constant 0 : index
    %0 = vector.load %arg1[%c0, %c0_0] : memref<2x1024xf32, #tpu.memory_space<vmem>>, vector<2x1024xf32>
    %cst = arith.constant dense<0.000000e+00> : vector<2xf32>
    %1 = vector.multi_reduction <add>, %0, %cst [1] : vector<2x1024xf32> to vector<2xf32>
    %2 = vector.shape_cast %1 : vector<2xf32> to vector<2x1xf32>
    %cst_1 = arith.constant 1.024000e+03 : f32
    %3 = vector.broadcast %cst_1 : f32 to vector<2x1xf32>
    %4 = arith.divf %2, %3 : vector<2x1xf32>
    %5 = vector.broadcast %4 : vector<2x1xf32> to vector<2x1024xf32>
    %6 = arith.subf %0, %5 : vector<2x1024xf32>
    %7 = arith.mulf %6, %6 : vector<2x1024xf32>
    %cst_2 = arith.constant dense<0.000000e+00> : vector<2xf32>
    %8 = vector.multi_reduction <add>, %7, %cst_2 [1] : vector<2x1024xf32> to vector<2xf32>
    %9 = vector.shape_cast %8 : vector<2xf32> to vector<2x1xf32>
    %cst_3 = arith.constant 1.024000e+03 : f32
    %10 = vector.broadcast %cst_3 : f32 to vector<2x1xf32>
    %11 = arith.divf %9, %10 : vector<2x1xf32>
    %cst_4 = arith.constant 9.99999974E-6 : f32
    %12 = vector.broadcast %cst_4 : f32 to vector<2x1xf32>
    %13 = arith.addf %11, %12 : vector<2x1xf32>
    %14 = math.rsqrt %13 : vector<2x1xf32>
    %15 = vector.broadcast %14 : vector<2x1xf32> to vector<2x1024xf32>
    %16 = arith.mulf %6, %15 : vector<2x1024xf32>
    %c0_5 = arith.constant 0 : index
    %c0_6 = arith.constant 0 : index
    %17 = vector.load %arg2[%c0_5, %c0_6] : memref<1x1024xf32, #tpu.memory_space<vmem>>, vector<1x1024xf32>
    %c0_7 = arith.constant 0 : index
    %c0_8 = arith.constant 0 : index
    %18 = vector.load %arg3[%c0_7, %c0_8] : memref<1x1024xf32, #tpu.memory_space<vmem>>, vector<1x1024xf32>
    %19 = vector.broadcast %17 : vector<1x1024xf32> to vector<2x1024xf32>
    %20 = arith.mulf %16, %19 : vector<2x1024xf32>
    %21 = vector.broadcast %18 : vector<1x1024xf32> to vector<2x1024xf32>
    %22 = arith.addf %20, %21 : vector<2x1024xf32>
    %c0_9 = arith.constant 0 : index
    %c0_10 = arith.constant 0 : index
    %23 = vector.load %arg4[%c0_9, %c0_10] : memref<2x1024xf32, #tpu.memory_space<vmem>>, vector<2x1024xf32>
    tpu.vector_store %arg4[%c0_9, %c0_10], %22 {strides = array<i32>} : memref<2x1024xf32, #tpu.memory_space<vmem>>, vector<2x1024xf32>,
    return
  }
  func.func @transform_0(%arg0: i32) -> (i32, i32) {
    %c0_i32 = arith.constant 0 : i32
    %c0_i32_0 = arith.constant 0 : i32
    return %arg0, %c0_i32 : i32, i32
  }
  func.func @transform_1(%arg0: i32) -> (i32, i32) {
    %c0_i32 = arith.constant 0 : i32
    %c0_i32_0 = arith.constant 0 : i32
    %c0_i32_1 = arith.constant 0 : i32
    return %c0_i32, %c0_i32_0 : i32, i32
  }
  func.func @transform_2(%arg0: i32) -> (i32, i32) {
    %c0_i32 = arith.constant 0 : i32
    %c0_i32_0 = arith.constant 0 : i32
    %c0_i32_1 = arith.constant 0 : i32
    return %c0_i32, %c0_i32_0 : i32, i32
  }
  func.func @transform_3(%arg0: i32) -> (i32, i32) {
    %c0_i32 = arith.constant 0 : i32
    %c0_i32_0 = arith.constant 0 : i32
    return %arg0, %c0_i32 : i32, i32
  }
}

</mosaic_0001>

<llo_original>
// kernel: tpu_custom_call.1
$region0: #{tpu_custom_call.1}
  #allocation0 [shape = 'u32[]', space=smem, size = 0x4, offset = 0x4, fixed_abs, tag = 'smem constant byte address 0x4 - core index']
  #allocation1 [shape = 'u32[144,128]{1,0:T(1,128)}', space=vmem, size = 0x12000, scoped, tag = 'internal scratch']
  %s0 = inlined_call_operand.hbm [shape: f32[2,1024], index: 0, kind: input, shape index: {}]
  %s1 = inlined_call_operand.hbm [shape: f32[1,1024], index: 1, kind: input, shape index: {}]
  %s2 = inlined_call_operand.hbm [shape: f32[1,1024], index: 2, kind: input, shape index: {}]
  %s3 = inlined_call_operand.hbm [shape: f32[2,1024], index: 3, kind: output, shape index: {}]
  %s4 = sld [smem:[#allocation0]]
  $region34: #{tpu_custom_call.1} parent=0
    _
  %s6 = ssub.s32 1, %s4
  %s7 = scalar_select 0, %s6, %s4
  $region1: #{tpu_custom_call.1} parent=0
    #allocation2 [shape = 'u8[8192]{0}', space=vmem, size = 0x2000, scoped, tag = 'input window, operand 0, single buffered']
    #allocation3 [shape = 's32[1]{0}', space=sflag, size = 0x4, scoped, tag = 'scoped memory for tpu_custom_call.1']
    #allocation4 [shape = 's32[1]{0}', space=sflag, size = 0x4, scoped, tag = 'scoped memory for tpu_custom_call.1']
    #allocation5 [shape = 'u8[4096]{0}', space=vmem, size = 0x1000, scoped, tag = 'input window, operand 1, single buffered']
    #allocation6 [shape = 's32[1]{0}', space=sflag, size = 0x4, scoped, tag = 'scoped memory for tpu_custom_call.1']
    #allocation7 [shape = 'u8[4096]{0}', space=vmem, size = 0x1000, scoped, tag = 'input window, operand 2, single buffered']
    #allocation8 [shape = 'u8[8192]{0}', space=vmem, size = 0x2000, scoped, tag = 'output window, operand 0, single buffered']
    %8 = vsyncpa [#allocation3], 0
    %9 = vsyncpa [#allocation6], 0
    %10 = vsyncpa [#allocation4], 0
    // Predicated region
    $region2: #{tpu_custom_call.1} parent=1 // pred_check
      _
    $region3: #{tpu_custom_call.1} parent=1 // pred_check_branch
      %12 = sbr.rel (0) target = $region5
    $region4: #{tpu_custom_call.1} parent=1 // pred_region
      %s14 = ssub.s32 256, 256
      %15 = vsyncadd [#allocation3], %s14
      %s17 = sshll.u32 [#allocation2], 4
      %s18 = int_to_ptr.vmem [resolvable:$true] %s17
      %20 = dma.hbm_to_vmem [thread:$0]  %s0, 256, %s18, [#allocation3]
    $region5: #{tpu_custom_call.1} parent=1 // pred_fallthru
      _
    // Predicated region
    $region6: #{tpu_custom_call.1} parent=1 // pred_check
      _
    $region7: #{tpu_custom_call.1} parent=1 // pred_check_branch
      %22 = sbr.rel (0) target = $region9
    $region8: #{tpu_custom_call.1} parent=1 // pred_region
      %s24 = ssub.s32 128, 128
      %25 = vsyncadd [#allocation6], %s24
      %s27 = sshll.u32 [#allocation5], 4
      %s28 = int_to_ptr.vmem [resolvable:$true] %s27
      %30 = dma.hbm_to_vmem [thread:$0]  %s1, 128, %s28, [#allocation6]
    $region9: #{tpu_custom_call.1} parent=1 // pred_fallthru
      _
    // Predicated region
    $region10: #{tpu_custom_call.1} parent=1 // pred_check
      _
    $region11: #{tpu_custom_call.1} parent=1 // pred_check_branch
      %32 = sbr.rel (0) target = $region13
    $region12: #{tpu_custom_call.1} parent=1 // pred_region
      %s34 = ssub.s32 128, 128
      %35 = vsyncadd [#allocation6], %s34
      %s37 = sshll.u32 [#allocation7], 4
      %s38 = int_to_ptr.vmem [resolvable:$true] %s37
      %40 = dma.hbm_to_vmem [thread:$0]  %s2, 128, %s38, [#allocation6]
    $region13: #{tpu_custom_call.1} parent=1 // pred_fallthru
      _
    // Predicated region
    $region14: #{tpu_custom_call.1} parent=1 // pred_check
      _
    $region15: #{tpu_custom_call.1} parent=1 // pred_check_branch
      %42 = sbr.rel (0) target = $region17
    $region16: #{tpu_custom_call.1} parent=1 // pred_region
      %43 = dma.done [#allocation3], 256
    $region17: #{tpu_custom_call.1} parent=1 // pred_fallthru
      _
    // Predicated region
    $region18: #{tpu_custom_call.1} parent=1 // pred_check
      _
    $region19: #{tpu_custom_call.1} parent=1 // pred_check_branch
      %45 = sbr.rel (0) target = $region21
    $region20: #{tpu_custom_call.1} parent=1 // pred_region
      %46 = dma.done [#allocation6], 128
    $region21: #{tpu_custom_call.1} parent=1 // pred_fallthru
      _
    // Predicated region
    $region22: #{tpu_custom_call.1} parent=1 // pred_check
      _
    $region23: #{tpu_custom_call.1} parent=1 // pred_check_branch
      %48 = sbr.rel (0) target = $region25
    $region24: #{tpu_custom_call.1} parent=1 // pred_region
      %49 = dma.done [#allocation6], 128
    $region25: #{tpu_custom_call.1} parent=1 // pred_fallthru
      _
    %v50 = vld [vmem:[#allocation2] sm:$0xff]
    %v51 = vld [vmem:[#allocation2 + $0x8] sm:$0xff]
    %v54 = vcombine.high %v50, %v50
    %v56 = vunpack.c.l.s4 1983009808
    %v57 = vunpack.c.0.s8 %v56
    %v58 = vlaneseq
    %v59 = vshrl.u32 %v58, 7
    %v60 = vsub.s32 %v57, %v59
    %v61 = vrot.slane %v50, %v60
    %v63 = vunpack.c.l.s4 1983009808
    %v64 = vunpack.c.0.s8 %v63
    %v65 = vlaneseq
    %v66 = vshrl.u32 %v65, 7
    %v67 = vsub.s32 %v64, %v66
    %v68 = vrot.slane %v54, %v67
    %v69 = vcombine.high %v61, %v61
    %v70 = vcombine.high %v68, %v68
    %v71 = vcombine.high %v51, %v51
    %v73 = vunpack.c.l.s4 1983009808
    %v74 = vunpack.c.0.s8 %v73
    %v75 = vlaneseq
    %v76 = vshrl.u32 %v75, 7
    %v77 = vsub.s32 %v74, %v76
    %v78 = vrot.slane %v51, %v77
    %v80 = vunpack.c.l.s4 1983009808
    %v81 = vunpack.c.0.s8 %v80
    %v82 = vlaneseq
    %v83 = vshrl.u32 %v82, 7
    %v84 = vsub.s32 %v81, %v83
    %v85 = vrot.slane %v71, %v84
    %v86 = vcombine.high %v78, %v78
    %v87 = vcombine.high %v85, %v85
    %vm96 = vcmask 1041408
    %v97 = vsel %vm96, %v61, 0.0
    %v98 = vsel %vm96, %v69, 0.0
    %v99 = vadd.f32 %v97, %v98
    %v100 = vsel %vm96, %v68, 0.0
    %v101 = vadd.f32 %v99, %v100
    %v102 = vsel %vm96, %v70, 0.0
    %v103 = vadd.f32 %v101, %v102
    %v104 = vsel %vm96, %v78, 0.0
    %v105 = vadd.f32 %v103, %v104
    %v106 = vsel %vm96, %v86, 0.0
    %v107 = vadd.f32 %v105, %v106
    %v108 = vsel %vm96, %v85, 0.0
    %v109 = vadd.f32 %v107, %v108
    %v110 = vsel %vm96, %v87, 0.0
    %v111 = vadd.f32 %v109, %v110
    %112 = vadd.xlane.f32.xlu0 %v111
    %v113 = vpop.xlane.xlu0 %112
    %v114 = vrcp.pop 1024.0
    %v115 = vmul.f32 %v113, %v114
    %v118 = vunpack.c.l.s4 269488144
    %v119 = vunpack.c.0.s8 %v118
    %v120 = vlaneseq
    %v121 = vshrl.u32 %v120, 7
    %v122 = vsub.s32 %v119, %v121
    %v123 = vrot.slane %v115, %v122
    %v125 = vsub.f32 %v50, %v123
    %v126 = vsub.f32 %v51, %v123
    %v127 = vmul.f32 %v125, %v125
    %v128 = vmul.f32 %v126, %v126
    %v131 = vcombine.high %v127, %v127
    %v133 = vunpack.c.l.s4 1983009808
    %v134 = vunpack.c.0.s8 %v133
    %v135 = vlaneseq
    %v136 = vshrl.u32 %v135, 7
    %v137 = vsub.s32 %v134, %v136
    %v138 = vrot.slane %v127, %v137
    %v140 = vunpack.c.l.s4 1983009808
    %v141 = vunpack.c.0.s8 %v140
    %v142 = vlaneseq
    %v143 = vshrl.u32 %v142, 7
    %v144 = vsub.s32 %v141, %v143
    %v145 = vrot.slane %v131, %v144
    %v146 = vcombine.high %v138, %v138
    %v147 = vcombine.high %v145, %v145
    %v148 = vcombine.high %v128, %v128
    %v150 = vunpack.c.l.s4 1983009808
    %v151 = vunpack.c.0.s8 %v150
    %v152 = vlaneseq
    %v153 = vshrl.u32 %v152, 7
    %v154 = vsub.s32 %v151, %v153
    %v155 = vrot.slane %v128, %v154
    %v157 = vunpack.c.l.s4 1983009808
    %v158 = vunpack.c.0.s8 %v157
    %v159 = vlaneseq
    %v160 = vshrl.u32 %v159, 7
    %v161 = vsub.s32 %v158, %v160
    %v162 = vrot.slane %v148, %v161
    %v163 = vcombine.high %v155, %v155
    %v164 = vcombine.high %v162, %v162
    %v173 = vsel %vm96, %v138, 0.0
    %v174 = vsel %vm96, %v146, 0.0
    %v175 = vadd.f32 %v173, %v174
    %v176 = vsel %vm96, %v145, 0.0
    %v177 = vadd.f32 %v175, %v176
    %v178 = vsel %vm96, %v147, 0.0
    %v179 = vadd.f32 %v177, %v178
    %v180 = vsel %vm96, %v155, 0.0
    %v181 = vadd.f32 %v179, %v180
    %v182 = vsel %vm96, %v163, 0.0
    %v183 = vadd.f32 %v181, %v182
    %v184 = vsel %vm96, %v162, 0.0
    %v185 = vadd.f32 %v183, %v184
    %v186 = vsel %vm96, %v164, 0.0
    %v187 = vadd.f32 %v185, %v186
    %188 = vadd.xlane.f32.xlu0 %v187
    %v189 = vpop.xlane.xlu0 %188
    %v190 = vmul.f32 %v189, %v114
    %v191 = vadd.f32 %v190, 1e-05
    %v192 = vrsqrt.pop %v191
    %v195 = vunpack.c.l.s4 269488144
    %v196 = vunpack.c.0.s8 %v195
    %v197 = vlaneseq
    %v198 = vshrl.u32 %v197, 7
    %v199 = vsub.s32 %v196, %v198
    %v200 = vrot.slane %v192, %v199
    %v202 = vmul.f32 %v125, %v200
    %v203 = vmul.f32 %v126, %v200
    %v204 = vld [vmem:[#allocation5] sm:$0xff]
    %v205 = vld [vmem:[#allocation7] sm:$0xff]
    %v207 = vlaneseq
    %v208 = vshrl.u32 %v207, 7
    %v209 = vsub.s32 0, %v208
    %v210 = vrot.slane %v204, %v209
    %v211 = vlaneseq
    %v212 = vshrl.u32 %v211, 7
    %v213 = vsub.s32 1, %v212
    %v214 = vrot.slane %v204, %v213
    %v215 = vlaneseq
    %v216 = vshrl.u32 %v215, 7
    %v217 = vsub.s32 2, %v216
    %v218 = vrot.slane %v204, %v217
    %v219 = vlaneseq
    %v220 = vshrl.u32 %v219, 7
    %v221 = vsub.s32 3, %v220
    %v222 = vrot.slane %v204, %v221
    %v223 = vlaneseq
    %v224 = vshrl.u32 %v223, 7
    %v225 = vsub.s32 4, %v224
    %v226 = vrot.slane %v204, %v225
    %v227 = vlaneseq
    %v228 = vshrl.u32 %v227, 7
    %v229 = vsub.s32 5, %v228
    %v230 = vrot.slane %v204, %v229
    %v231 = vlaneseq
    %v232 = vshrl.u32 %v231, 7
    %v233 = vsub.s32 6, %v232
    %v234 = vrot.slane %v204, %v233
    %v235 = vlaneseq
    %v236 = vshrl.u32 %v235, 7
    %v237 = vsub.s32 7, %v236
    %v238 = vrot.slane %v204, %v237
    %v239 = vcombine.low %v210, %v214
    %v240 = vcombine.low %v218, %v222
    %v242 = vunpack.c.l.s4 1983009808
    %v243 = vunpack.c.0.s8 %v242
    %v244 = vlaneseq
    %v245 = vshrl.u32 %v244, 7
    %v246 = vsub.s32 %v243, %v245
    %v247 = vrot.slane %v239, %v246
    %v249 = vunpack.c.l.s4 1983009808
    %v250 = vunpack.c.0.s8 %v249
    %v251 = vlaneseq
    %v252 = vshrl.u32 %v251, 7
    %v253 = vsub.s32 %v250, %v252
    %v254 = vrot.slane %v240, %v253
    %v255 = vcombine.low %v247, %v254
    %v256 = vcombine.low %v226, %v230
    %v257 = vcombine.low %v234, %v238
    %v259 = vunpack.c.l.s4 1983009808
    %v260 = vunpack.c.0.s8 %v259
    %v261 = vlaneseq
    %v262 = vshrl.u32 %v261, 7
    %v263 = vsub.s32 %v260, %v262
    %v264 = vrot.slane %v256, %v263
    %v266 = vunpack.c.l.s4 1983009808
    %v267 = vunpack.c.0.s8 %v266
    %v268 = vlaneseq
    %v269 = vshrl.u32 %v268, 7
    %v270 = vsub.s32 %v267, %v269
    %v271 = vrot.slane %v257, %v270
    %v272 = vcombine.low %v264, %v271
    %v275 = vmul.f32 %v202, %v255
    %v276 = vmul.f32 %v203, %v272
    %v278 = vlaneseq
    %v279 = vshrl.u32 %v278, 7
    %v280 = vsub.s32 0, %v279
    %v281 = vrot.slane %v205, %v280
    %v282 = vlaneseq
    %v283 = vshrl.u32 %v282, 7
    %v284 = vsub.s32 1, %v283
    %v285 = vrot.slane %v205, %v284
    %v286 = vlaneseq
    %v287 = vshrl.u32 %v286, 7
    %v288 = vsub.s32 2, %v287
    %v289 = vrot.slane %v205, %v288
    %v290 = vlaneseq
    %v291 = vshrl.u32 %v290, 7
    %v292 = vsub.s32 3, %v291
    %v293 = vrot.slane %v205, %v292
    %v294 = vlaneseq
    %v295 = vshrl.u32 %v294, 7
    %v296 = vsub.s32 4, %v295
    %v297 = vrot.slane %v205, %v296
    %v298 = vlaneseq
    %v299 = vshrl.u32 %v298, 7
    %v300 = vsub.s32 5, %v299
    %v301 = vrot.slane %v205, %v300
    %v302 = vlaneseq
    %v303 = vshrl.u32 %v302, 7
    %v304 = vsub.s32 6, %v303
    %v305 = vrot.slane %v205, %v304
    %v306 = vlaneseq
    %v307 = vshrl.u32 %v306, 7
    %v308 = vsub.s32 7, %v307
    %v309 = vrot.slane %v205, %v308
    %v310 = vcombine.low %v281, %v285
    %v311 = vcombine.low %v289, %v293
    %v313 = vunpack.c.l.s4 1983009808
    %v314 = vunpack.c.0.s8 %v313
    %v315 = vlaneseq
    %v316 = vshrl.u32 %v315, 7
    %v317 = vsub.s32 %v314, %v316
    %v318 = vrot.slane %v310, %v317
    %v320 = vunpack.c.l.s4 1983009808
    %v321 = vunpack.c.0.s8 %v320
    %v322 = vlaneseq
    %v323 = vshrl.u32 %v322, 7
    %v324 = vsub.s32 %v321, %v323
    %v325 = vrot.slane %v311, %v324
    %v326 = vcombine.low %v318, %v325
    %v327 = vcombine.low %v297, %v301
    %v328 = vcombine.low %v305, %v309
    %v330 = vunpack.c.l.s4 1983009808
    %v331 = vunpack.c.0.s8 %v330
    %v332 = vlaneseq
    %v333 = vshrl.u32 %v332, 7
    %v334 = vsub.s32 %v331, %v333
    %v335 = vrot.slane %v327, %v334
    %v337 = vunpack.c.l.s4 1983009808
    %v338 = vunpack.c.0.s8 %v337
    %v339 = vlaneseq
    %v340 = vshrl.u32 %v339, 7
    %v341 = vsub.s32 %v338, %v340
    %v342 = vrot.slane %v328, %v341
    %v343 = vcombine.low %v335, %v342
    %v346 = vadd.f32 %v275, %v326
    %v347 = vadd.f32 %v276, %v343
    %348 = vst [vmem:[#allocation8] sm:$0xff] %v346
    %349 = vst [vmem:[#allocation8 + $0x8] sm:$0xff] %v347
    // Predicated region
    $region26: #{tpu_custom_call.1} parent=1 // pred_check
      _
    $region27: #{tpu_custom_call.1} parent=1 // pred_check_branch
      %351 = sbr.rel (0) target = $region29
    $region28: #{tpu_custom_call.1} parent=1 // pred_region
      %s353 = ssub.s32 256, 256
      %354 = vsyncadd [#allocation4], %s353
      %s356 = sshll.u32 [#allocation8], 4
      %s357 = int_to_ptr.vmem [resolvable:$true] %s356
      %359 = dma.vmem_to_hbm [thread:$0]  %s357, 256, %s3, [#allocation4]
    $region29: #{tpu_custom_call.1} parent=1 // pred_fallthru
      _
    // Predicated region
    $region30: #{tpu_custom_call.1} parent=1 // pred_check
      _
    $region31: #{tpu_custom_call.1} parent=1 // pred_check_branch
      %361 = sbr.rel (0) target = $region33
    $region32: #{tpu_custom_call.1} parent=1 // pred_region
      %362 = dma.done [#allocation4], 256
    $region33: #{tpu_custom_call.1} parent=1 // pred_fallthru
      _
    %363 = vsyncpa [#allocation3], 1
    %364 = vsyncpa [#allocation6], 1
    %365 = vsyncpa [#allocation4], 1

</llo_original>
